<compile_context>
chip_gen: v6e
topology: v6e:2x2x1
jax: 0.10.0
libtpu: 0.0.40
codegen_flags: <defaults>
</compile_context>

<pallas_src>
import math
from functools import partial

import jax
import jax.numpy as jnp
from jax.experimental import pallas as pl
from jax.experimental.pallas import tpu as pltpu


_ROW_QUANT = 16  # row-tile quantum (covers bf16 sublane packing)


def _round_up(x: int, m: int) -> int:
    return ((x + m - 1) // m) * m


def _cdiv(a: int, b: int) -> int:
    return -(-a // b)


# ---------------------------------------------------------------------------
# Kernel 1: per-head K row-sums (K never materialized) + fused V@Wo weight.
# ---------------------------------------------------------------------------
def _project_kernel(src_ref, val_ref, wkhs_ref, bkhs_ref, wv_ref, bv_ref,
                    wo_ref, rsum_ref, wfused_ref, *, n_heads, d_keys):
    H, dk = n_heads, d_keys
    # rsum[s, h] = sum_e K[s, h, e] = src[s] @ Wk_headsum[:, h] + bk_headsum[h]
    rsum_ref[...] = (jnp.dot(src_ref[...], wkhs_ref[...],
                             preferred_element_type=jnp.float32)
                     + bkhs_ref[...])                                  # (S, H)

    V = (jnp.dot(val_ref[...], wv_ref[...],
                 preferred_element_type=jnp.float32) + bv_ref[...])    # (S, H*dk)

    # Wfused[h*S:(h+1)*S, :] = V_h @ Wo_h  -> single wide matmul in kernel 2.
    blocks = [jnp.dot(V[:, h * dk:(h + 1) * dk],
                      wo_ref[h * dk:(h + 1) * dk, :],
                      preferred_element_type=jnp.float32)
              for h in range(H)]                                       # H x (S, d_llm)
    wfused_ref[...] = jnp.concatenate(blocks, axis=0).astype(wfused_ref.dtype)


# ---------------------------------------------------------------------------
# Kernel 2: row-tiled factorized attention + fused output projection.
# ---------------------------------------------------------------------------
def _attend_kernel(ts_ref, rflat_ref, rmax_ref, rmin_ref, kvany_ref,
                   seg_ref, segT_ref, wfused_ref, bo_ref, out_ref,
                   *, scale, mm_dtype):
    ts = ts_ref[...]                                         # (tm, 1) f32
    q = jnp.where(jnp.isnan(ts), jnp.float32(0.0), ts)       # NaN -> 0
    qs = q * jnp.float32(scale)                              # (tm, 1)

    # scores factorize: s[i, h*S+j] = qs[i] * rsum[j, h]   (VPU outer product)
    s = qs * rflat_ref[...]                                  # (tm, H*S)
    # analytic per-head row max (no XLU reduction): qs*rmax_h if qs>=0 else qs*rmin_h
    m = qs * jnp.where(qs >= 0.0, rmax_ref[...], rmin_ref[...])
    e = jnp.exp(s - m)                                       # EUP, (tm, H*S)
    e_mm = e.astype(mm_dtype)

    # per-head segment sums, broadcast back over each head's S-wide segment,
    # using two tiny 0/1 MXU pushes (no narrow per-head XLU sums / relayouts).
    denom_h = jnp.dot(e_mm, seg_ref[...],
                      preferred_element_type=jnp.float32)            # (tm, H)
    denom = jnp.dot(denom_h.astype(mm_dtype), segT_ref[...],
                    preferred_element_type=jnp.float32)              # (tm, H*S)
    a = e * pl.reciprocal(denom, approx=True)                # softmax weights

    # single wide projection with the pre-fused V@Wo weight (resident, mm_dtype)
    out = jnp.dot(a.astype(mm_dtype), wfused_ref[...],
                  preferred_element_type=jnp.float32) + bo_ref[...]  # (tm, d_llm)

    # mask[i] = (q[i] != 0) AND any_{h,s}(rowsum != 0).  Matches the reference
    # (q*rowsum != 0) unless q*rowsum underflows to exactly 0 (denormal inputs).
    mask = (q != jnp.float32(0.0)).astype(jnp.float32) * kvany_ref[0, 0]
    out_ref[...] = (out * mask).astype(out_ref.dtype)


# ---------------------------------------------------------------------------
# Tile sizing: from the output-VMEM budget, with >=2 (preferably even) steps.
# ---------------------------------------------------------------------------
def _choose_row_tile(M, row_out_bytes, budget_bytes):
    tm = budget_bytes // max(1, 2 * row_out_bytes)           # 2 output buffers
    tm = max(_ROW_QUANT, (tm // _ROW_QUANT) * _ROW_QUANT)
    # at least 2 grid steps so both TensorCores get work on megacore parts (v7x)
    tm = min(tm, max(_ROW_QUANT, _round_up(_cdiv(M, 2), _ROW_QUANT)))
    steps = _cdiv(M, tm)
    if steps > 1 and steps % 2 == 1:                         # balanced 2-way split
        tm = max(_ROW_QUANT, _round_up(_cdiv(M, steps + 1), _ROW_QUANT))
    return tm


# ---------------------------------------------------------------------------
# Wrapper
# ---------------------------------------------------------------------------
def reprogramming_layer_forward(time_series, source_embedding, value_embedding,
                                params, *, n_heads, d_keys,
                                mm_dtype=jnp.bfloat16, out_dtype=jnp.bfloat16,
                                out_buffer_budget_bytes=8 << 20,
                                vmem_limit_bytes=None):
    """Forward pass of ReprogrammingLayer.  Pass mm_dtype/out_dtype=jnp.float32
    for bit-closer numerics (bf16 defaults trade ~1% relative error for speed)."""
    B, T, N = time_series.shape
    S, d_llm = source_embedding.shape
    H, dk = n_heads, d_keys
    HS = H * S
    f32 = jnp.float32

    src = source_embedding.astype(f32)
    val = value_embedding.astype(f32)
    p = {k: v.astype(f32) for k, v in params.items()}

    # tiny parameter-side precompute: collapse the K projection to per-head
    # column sums so K is never materialized anywhere.
    wk_hs = p["Wk"].reshape(d_llm, H, dk).sum(axis=-1)           # (d_llm, H)
    bk_hs = p["bk"].reshape(H, dk).sum(axis=-1).reshape(1, H)    # (1, H)

    # ---- Kernel 1: once per call ------------------------------------------
    rsum, wfused = pl.pallas_call(
        partial(_project_kernel, n_heads=H, d_keys=dk),
        out_shape=(jax.ShapeDtypeStruct((S, H), f32),
                   jax.ShapeDtypeStruct((HS, d_llm), mm_dtype)),
        in_specs=[pl.BlockSpec(memory_space=pltpu.MemorySpace.VMEM)] * 7,
        out_specs=(pl.BlockSpec(memory_space=pltpu.MemorySpace.VMEM),
                   pl.BlockSpec(memory_space=pltpu.MemorySpace.VMEM)),
    )(src, val, wk_hs, bk_hs, p["Wv"], p["bv"], p["Wo"])

    # once-per-call layout plumbing on tiny (S, H) arrays (plain JAX)
    rflat = rsum.T.reshape(1, HS)                     # rflat[0, h*S+s] = rsum[s, h]
    rmax_flat = jnp.repeat(jnp.max(rsum, axis=0), S).reshape(1, HS)
    rmin_flat = jnp.repeat(jnp.min(rsum, axis=0), S).reshape(1, HS)
    kv_any = jnp.any(rsum != 0.0).astype(f32).reshape(1, 1)
    # 0/1 segment matrices for per-head softmax sums (exact in bf16)
    seg = jnp.kron(jnp.eye(H, dtype=f32), jnp.ones((S, 1), f32))   # (HS, H)
    seg_mm = seg.astype(mm_dtype)
    segT_mm = seg.T.astype(mm_dtype)                               # (H, HS)
    bo = p["bo"]                                                   # (1, d_llm)

    # ---- Kernel 2: row-tiled attention over M = B*N*T rows -----------------
    M = B * N * T
    ts_flat = jnp.transpose(time_series, (0, 2, 1)).reshape(M, 1).astype(f32)

    out_bytes = jnp.dtype(out_dtype).itemsize
    mm_bytes = jnp.dtype(mm_dtype).itemsize
    tm = _choose_row_tile(M, d_llm * out_bytes, out_buffer_budget_bytes)
    M_pad = _round_up(M, tm)
    if M_pad != M:
        ts_flat = jnp.pad(ts_flat, ((0, M_pad - M), (0, 0)))
    grid = (M_pad // tm,)

    resident_bytes = (3 * HS * 4 + 2 * HS * H * mm_bytes
                      + HS * d_llm * mm_bytes + d_llm * 4)
    if vmem_limit_bytes is None:
        est = (2 * tm * 4 + 2 * tm * d_llm * out_bytes
               + 2 * resident_bytes + (4 << 20))
        vmem_limit_bytes = int(min(64 << 20, max(32 << 20, est)))

    cost = pl.CostEstimate(
        flops=2 * M_pad * HS * (d_llm + 2 * H),
        transcendentals=2 * M_pad * HS,                 # exp + approx reciprocal
        bytes_accessed=M_pad * 4 + M_pad * d_llm * out_bytes + resident_bytes,
    )

    out_flat = pl.pallas_call(
        partial(_attend_kernel, scale=1.0 / math.sqrt(dk), mm_dtype=mm_dtype),
        out_shape=jax.ShapeDtypeStruct((M_pad, d_llm), out_dtype),
        grid=grid,
        in_specs=[
            pl.BlockSpec((tm, 1), lambda i: (i, 0)),            # ts rows (tiled)
            pl.BlockSpec((1, HS), lambda i: (0, 0)),            # rflat   (resident)
            pl.BlockSpec((1, HS), lambda i: (0, 0)),            # rmax    (resident)
            pl.BlockSpec((1, HS), lambda i: (0, 0)),            # rmin    (resident)
            pl.BlockSpec(memory_space=pltpu.MemorySpace.SMEM),  # kv_any scalar
            pl.BlockSpec((HS, H), lambda i: (0, 0)),            # seg     (resident)
            pl.BlockSpec((H, HS), lambda i: (0, 0)),            # segT    (resident)
            pl.BlockSpec((HS, d_llm), lambda i: (0, 0)),        # Wfused  (resident)
            pl.BlockSpec((1, d_llm), lambda i: (0, 0)),         # bo      (resident)
        ],
        out_specs=pl.BlockSpec((tm, d_llm), lambda i: (i, 0)),
        compiler_params=pltpu.CompilerParams(
            dimension_semantics=("parallel",),
            vmem_limit_bytes=vmem_limit_bytes),
        cost_estimate=cost,
    )(ts_flat, rflat, rmax_flat, rmin_flat, kv_any, seg_mm, segT_mm, wfused, bo)

    return out_flat[:M, :].reshape(B * N, T, d_llm)


# ---------------------------------------------------------------------------
# Pure-JAX reference (mirrors the PyTorch module) for in-script validation.
# ---------------------------------------------------------------------------
def _reference_forward(time_series, src, val, params, *, n_heads, d_keys):
    B, T, N = time_series.shape
    S, d_llm = src.shape
    H, dk = n_heads, d_keys
    x = jnp.transpose(time_series, (0, 2, 1)).reshape(B * N, T)
    q = jnp.where(jnp.isnan(x), 0.0, x)
    Q = jnp.broadcast_to(q[:, :, None, None], (B * N, T, H, dk))
    K = (src @ params["Wk"] + params["bk"]).reshape(S, H, dk)
    V = (val @ params["Wv"] + params["bv"]).reshape(S, H, dk)
    scores = jnp.einsum('bthe,she->bhts', Q, K)
    tmask = (jnp.sum((scores != 0).astype(jnp.float32), axis=-1) != 0).astype(jnp.float32)
    mask = jnp.max(tmask, axis=1)                                     # (B*N, T)
    A = jax.nn.softmax(scores / math.sqrt(dk), axis=-1)
    out = jnp.einsum('bhts,she->bthe', A, V).reshape(B * N, T, H * dk)
    out = out @ params["Wo"] + params["bo"]
    return out * mask[:, :, None]


if __name__ == "__main__":
    # small shapes consistent with the module
    B, T, N = 2, 8, 4
    d_model, n_heads, d_llm = 32, 4, 32
    d_keys = d_model // n_heads          # 8
    S = 8

    key = jax.random.PRNGKey(0)
    ks = jax.random.split(key, 9)

    time_series = jax.random.normal(ks[0], (B, T, N), jnp.float32)
    # exercise the NaN-masking path (one whole variable of one batch is NaN)
    time_series = time_series.at[0, :, 1].set(jnp.nan)

    source_embedding = jax.random.normal(ks[1], (S, d_llm), jnp.float32)
    value_embedding = jax.random.normal(ks[2], (S, d_llm), jnp.float32)

    def lin_init(k, fan_in, shape):
        bound = 1.0 / math.sqrt(fan_in)
        return jax.random.uniform(k, shape, jnp.float32, -bound, bound)

    # PyTorch nn.Linear weights stored pre-transposed: (in_features, out_features)
    params = {
        "Wk": lin_init(ks[3], d_llm, (d_llm, n_heads * d_keys)),
        "bk": lin_init(ks[4], d_llm, (1, n_heads * d_keys)),
        "Wv": lin_init(ks[5], d_llm, (d_llm, n_heads * d_keys)),
        "bv": lin_init(ks[6], d_llm, (1, n_heads * d_keys)),
        "Wo": lin_init(ks[7], n_heads * d_keys, (n_heads * d_keys, d_llm)),
        "bo": lin_init(ks[8], n_heads * d_keys, (1, d_llm)),
    }

    ref = _reference_forward(time_series, source_embedding, value_embedding,
                             params, n_heads=n_heads, d_keys=d_keys)

    # default path: bf16 MXU operands + bf16 HBM writeback
    result = reprogramming_layer_forward(
        time_series, source_embedding, value_embedding, params,
        n_heads=n_heads, d_keys=d_keys)
    jax.block_until_ready(result)

    assert result.shape == (B * N, T, d_llm)
    assert result.dtype == jnp.bfloat16
    r32 = result.astype(jnp.float32)
    assert not bool(jnp.any(jnp.isnan(r32)))
    # rows that came from NaN inputs must be exactly zero (masked out)
    assert bool(jnp.all(r32.reshape(B, N, T, d_llm)[0, 1] == 0.0))
    assert bool(jnp.allclose(r32, ref, rtol=3e-2, atol=3e-2))

    # f32 path: tighter check against the PyTorch-equivalent reference
    result_f32 = reprogramming_layer_forward(
        time_series, source_embedding, value_embedding, params,
        n_heads=n_heads, d_keys=d_keys,
        mm_dtype=jnp.float32, out_dtype=jnp.float32)
    jax.block_until_ready(result_f32)
    assert result_f32.dtype == jnp.float32
    assert bool(jnp.allclose(result_f32, ref, rtol=2e-2, atol=5e-3))

    print("KERNEL_OK")
</pallas_src>

<mosaic_0001>
module attributes {stable_mosaic.version = 11 : i64} {
  func.func @_project_kernel(%arg0: memref<8x32xf32, #tpu.memory_space<vmem>>, %arg1: memref<8x32xf32, #tpu.memory_space<vmem>>, %arg2: memref<32x4xf32, #tpu.memory_space<vmem>>, %arg3: memref<1x4xf32, #tpu.memory_space<vmem>>, %arg4: memref<32x32xf32, #tpu.memory_space<vmem>>, %arg5: memref<1x32xf32, #tpu.memory_space<vmem>>, %arg6: memref<32x32xf32, #tpu.memory_space<vmem>>, %arg7: memref<8x4xf32, #tpu.memory_space<vmem>>, %arg8: memref<32x32xbf16, #tpu.memory_space<vmem>>) attributes {dimension_semantics = [], scalar_prefetch = 0 : i64, scratch_operands = 0 : i64, tpu.core_type = #tpu.core_type<tc>} {
    %c0 = arith.constant 0 : index
    %c0_0 = arith.constant 0 : index
    %0 = vector.load %arg0[%c0, %c0_0] : memref<8x32xf32, #tpu.memory_space<vmem>>, vector<8x32xf32>
    %c0_1 = arith.constant 0 : index
    %c0_2 = arith.constant 0 : index
    %1 = vector.load %arg2[%c0_1, %c0_2] : memref<32x4xf32, #tpu.memory_space<vmem>>, vector<32x4xf32>
    %cst = arith.constant dense<0.000000e+00> : vector<8x4xf32>
    %2 = tpu.matmul %0, %1, %cst {dimension_numbers = #tpu.dot_dimension_numbers<[1], [0], [0], [1], [0, 0, 1, 1], [], []>} : vector<8x32xf32>, vector<32x4xf32>, vector<8x4xf32> -> vector<8x4xf32>
    %c0_3 = arith.constant 0 : index
    %c0_4 = arith.constant 0 : index
    %3 = vector.load %arg3[%c0_3, %c0_4] : memref<1x4xf32, #tpu.memory_space<vmem>>, vector<1x4xf32>
    %4 = vector.broadcast %3 : vector<1x4xf32> to vector<8x4xf32>
    %5 = arith.addf %2, %4 : vector<8x4xf32>
    %c0_5 = arith.constant 0 : index
    %c0_6 = arith.constant 0 : index
    %6 = vector.load %arg7[%c0_5, %c0_6] : memref<8x4xf32, #tpu.memory_space<vmem>>, vector<8x4xf32>
    tpu.vector_store %arg7[%c0_5, %c0_6], %5 {strides = array<i32>} : memref<8x4xf32, #tpu.memory_space<vmem>>, vector<8x4xf32>,
    %c0_7 = arith.constant 0 : index
    %c0_8 = arith.constant 0 : index
    %7 = vector.load %arg1[%c0_7, %c0_8] : memref<8x32xf32, #tpu.memory_space<vmem>>, vector<8x32xf32>
    %c0_9 = arith.constant 0 : index
    %c0_10 = arith.constant 0 : index
    %8 = vector.load %arg4[%c0_9, %c0_10] : memref<32x32xf32, #tpu.memory_space<vmem>>, vector<32x32xf32>
    %cst_11 = arith.constant dense<0.000000e+00> : vector<8x32xf32>
    %9 = tpu.matmul %7, %8, %cst_11 {dimension_numbers = #tpu.dot_dimension_numbers<[1], [0], [0], [1], [0, 0, 1, 1], [], []>} : vector<8x32xf32>, vector<32x32xf32>, vector<8x32xf32> -> vector<8x32xf32>
    %c0_12 = arith.constant 0 : index
    %c0_13 = arith.constant 0 : index
    %10 = vector.load %arg5[%c0_12, %c0_13] : memref<1x32xf32, #tpu.memory_space<vmem>>, vector<1x32xf32>
    %11 = vector.broadcast %10 : vector<1x32xf32> to vector<8x32xf32>
    %12 = arith.addf %9, %11 : vector<8x32xf32>
    %13 = vector.extract_strided_slice %12 {offsets = [0, 0], sizes = [8, 8], strides = [1, 1]} : vector<8x32xf32> to vector<8x8xf32>
    %c0_14 = arith.constant 0 : index
    %c0_15 = arith.constant 0 : index
    %14 = vector.load %arg6[%c0_14, %c0_15] : memref<32x32xf32, #tpu.memory_space<vmem>>, vector<8x32xf32>
    %cst_16 = arith.constant dense<0.000000e+00> : vector<8x32xf32>
    %15 = tpu.matmul %13, %14, %cst_16 {dimension_numbers = #tpu.dot_dimension_numbers<[1], [0], [0], [1], [0, 0, 1, 1], [], []>} : vector<8x8xf32>, vector<8x32xf32>, vector<8x32xf32> -> vector<8x32xf32>
    %16 = vector.extract_strided_slice %12 {offsets = [0, 8], sizes = [8, 8], strides = [1, 1]} : vector<8x32xf32> to vector<8x8xf32>
    %c8 = arith.constant 8 : index
    %c0_17 = arith.constant 0 : index
    %17 = vector.load %arg6[%c8, %c0_17] : memref<32x32xf32, #tpu.memory_space<vmem>>, vector<8x32xf32>
    %cst_18 = arith.constant dense<0.000000e+00> : vector<8x32xf32>
    %18 = tpu.matmul %16, %17, %cst_18 {dimension_numbers = #tpu.dot_dimension_numbers<[1], [0], [0], [1], [0, 0, 1, 1], [], []>} : vector<8x8xf32>, vector<8x32xf32>, vector<8x32xf32> -> vector<8x32xf32>
    %19 = vector.extract_strided_slice %12 {offsets = [0, 16], sizes = [8, 8], strides = [1, 1]} : vector<8x32xf32> to vector<8x8xf32>
    %c16 = arith.constant 16 : index
    %c0_19 = arith.constant 0 : index
    %20 = vector.load %arg6[%c16, %c0_19] : memref<32x32xf32, #tpu.memory_space<vmem>>, vector<8x32xf32>
    %cst_20 = arith.constant dense<0.000000e+00> : vector<8x32xf32>
    %21 = tpu.matmul %19, %20, %cst_20 {dimension_numbers = #tpu.dot_dimension_numbers<[1], [0], [0], [1], [0, 0, 1, 1], [], []>} : vector<8x8xf32>, vector<8x32xf32>, vector<8x32xf32> -> vector<8x32xf32>
    %22 = vector.extract_strided_slice %12 {offsets = [0, 24], sizes = [8, 8], strides = [1, 1]} : vector<8x32xf32> to vector<8x8xf32>
    %c24 = arith.constant 24 : index
    %c0_21 = arith.constant 0 : index
    %23 = vector.load %arg6[%c24, %c0_21] : memref<32x32xf32, #tpu.memory_space<vmem>>, vector<8x32xf32>
    %cst_22 = arith.constant dense<0.000000e+00> : vector<8x32xf32>
    %24 = tpu.matmul %22, %23, %cst_22 {dimension_numbers = #tpu.dot_dimension_numbers<[1], [0], [0], [1], [0, 0, 1, 1], [], []>} : vector<8x8xf32>, vector<8x32xf32>, vector<8x32xf32> -> vector<8x32xf32>
    %25 = tpu.concatenate %15, %18, %21, %24 in 0 : vector<8x32xf32>, vector<8x32xf32>, vector<8x32xf32>, vector<8x32xf32> -> vector<32x32xf32>
    %26 = arith.truncf %25 : vector<32x32xf32> to vector<32x32xbf16>
    %c0_23 = arith.constant 0 : index
    %c0_24 = arith.constant 0 : index
    %27 = vector.load %arg8[%c0_23, %c0_24] : memref<32x32xbf16, #tpu.memory_space<vmem>>, vector<32x32xbf16>
    tpu.vector_store %arg8[%c0_23, %c0_24], %26 {strides = array<i32>} : memref<32x32xbf16, #tpu.memory_space<vmem>>, vector<32x32xbf16>,
    return
  }
}

</mosaic_0001>

<llo_original>
// kernel: tpu_custom_call.1
$region0: #{tpu_custom_call.1}
  #allocation0 [shape = 'u32[]', space=smem, size = 0x4, offset = 0x4, fixed_abs, tag = 'smem constant byte address 0x4 - core index']
  #allocation1 [shape = 'u32[144,128]{1,0:T(1,128)}', space=vmem, size = 0x12000, scoped, tag = 'internal scratch']
  %s0 = inlined_call_operand.vmem [shape: f32[8,32], index: 0, kind: input, shape index: {}]
  %s1 = inlined_call_operand.hbm [shape: f32[8,32], index: 1, kind: input, shape index: {}]
  %s2 = inlined_call_operand.vmem [shape: f32[32,4], index: 2, kind: input, shape index: {}]
  %s3 = inlined_call_operand.vmem [shape: f32[1,4], index: 3, kind: input, shape index: {}]
  %s4 = inlined_call_operand.vmem [shape: f32[32,32], index: 4, kind: input, shape index: {}]
  %s5 = inlined_call_operand.vmem [shape: f32[1,32], index: 5, kind: input, shape index: {}]
  %s6 = inlined_call_operand.hbm [shape: f32[32,32], index: 6, kind: input, shape index: {}]
  %s7 = inlined_call_operand.vmem [shape: f32[8,4], index: 7, kind: output, shape index: {0}]
  %s8 = inlined_call_operand.hbm [shape: bf16[32,32], index: 8, kind: output, shape index: {1}]
  %9 = xla_tuple %s7, %s8
  %s10 = sld [smem:[#allocation0]]
  $region54: #{tpu_custom_call.1} parent=0
    _
  %s12 = ssub.s32 1, %s10
  %s13 = scalar_select 0, %s12, %s10
  $region1: #{tpu_custom_call.1} parent=0
    #allocation2 [shape = 'u8[4096]{0}', space=vmem, size = 0x1000, scoped, tag = 'input window, operand 1, single buffered']
    #allocation3 [shape = 's32[1]{0}', space=sflag, size = 0x4, scoped, tag = 'scoped memory for tpu_custom_call.1']
    #allocation4 [shape = 's32[1]{0}', space=sflag, size = 0x4, scoped, tag = 'scoped memory for tpu_custom_call.1']
    #allocation5 [shape = 'u8[16384]{0}', space=vmem, size = 0x4000, scoped, tag = 'input window, operand 6, single buffered']
    #allocation6 [shape = 's32[1]{0}', space=sflag, size = 0x4, scoped, tag = 'scoped memory for tpu_custom_call.1']
    #allocation7 [shape = 'u8[8192]{0}', space=vmem, size = 0x2000, scoped, tag = 'output window, operand 1, single buffered']
    %14 = vsyncpa [#allocation3], 0
    %15 = vsyncpa [#allocation6], 0
    %16 = vsyncpa [#allocation4], 0
    // Predicated region
    $region2: #{tpu_custom_call.1} parent=1 // pred_check
      _
    $region3: #{tpu_custom_call.1} parent=1 // pred_check_branch
      %18 = sbr.rel (0) target = $region5
    $region4: #{tpu_custom_call.1} parent=1 // pred_region
      _
    $region5: #{tpu_custom_call.1} parent=1 // pred_fallthru
      _
    // Predicated region
    $region6: #{tpu_custom_call.1} parent=1 // pred_check
      _
    $region7: #{tpu_custom_call.1} parent=1 // pred_check_branch
      %20 = sbr.rel (0) target = $region9
    $region8: #{tpu_custom_call.1} parent=1 // pred_region
      %s22 = ssub.s32 128, 128
      %23 = vsyncadd [#allocation3], %s22
      %s25 = sshll.u32 [#allocation2], 4
      %s26 = int_to_ptr.vmem [resolvable:$true] %s25
      %28 = dma.hbm_to_vmem [thread:$0]  %s1, 128, %s26, [#allocation3]
    $region9: #{tpu_custom_call.1} parent=1 // pred_fallthru
      _
    // Predicated region
    $region10: #{tpu_custom_call.1} parent=1 // pred_check
      _
    $region11: #{tpu_custom_call.1} parent=1 // pred_check_branch
      %30 = sbr.rel (0) target = $region13
    $region12: #{tpu_custom_call.1} parent=1 // pred_region
      _
    $region13: #{tpu_custom_call.1} parent=1 // pred_fallthru
      _
    // Predicated region
    $region14: #{tpu_custom_call.1} parent=1 // pred_check
      _
    $region15: #{tpu_custom_call.1} parent=1 // pred_check_branch
      %32 = sbr.rel (0) target = $region17
    $region16: #{tpu_custom_call.1} parent=1 // pred_region
      _
    $region17: #{tpu_custom_call.1} parent=1 // pred_fallthru
      _
    // Predicated region
    $region18: #{tpu_custom_call.1} parent=1 // pred_check
      _
    $region19: #{tpu_custom_call.1} parent=1 // pred_check_branch
      %34 = sbr.rel (0) target = $region21
    $region20: #{tpu_custom_call.1} parent=1 // pred_region
      _
    $region21: #{tpu_custom_call.1} parent=1 // pred_fallthru
      _
    // Predicated region
    $region22: #{tpu_custom_call.1} parent=1 // pred_check
      _
    $region23: #{tpu_custom_call.1} parent=1 // pred_check_branch
      %36 = sbr.rel (0) target = $region25
    $region24: #{tpu_custom_call.1} parent=1 // pred_region
      _
    $region25: #{tpu_custom_call.1} parent=1 // pred_fallthru
      _
    // Predicated region
    $region26: #{tpu_custom_call.1} parent=1 // pred_check
      _
    $region27: #{tpu_custom_call.1} parent=1 // pred_check_branch
      %38 = sbr.rel (0) target = $region29
    $region28: #{tpu_custom_call.1} parent=1 // pred_region
      %s40 = ssub.s32 512, 512
      %41 = vsyncadd [#allocation6], %s40
      %s42 = sshll.u32 [#allocation5], 4
      %s43 = int_to_ptr.vmem [resolvable:$true] %s42
      %48 = dma.hbm_to_vmem [thread:$0]  %s6, 512, %s43, [#allocation6], 128, 128, 8
    $region29: #{tpu_custom_call.1} parent=1 // pred_fallthru
      _
    // Predicated region
    $region30: #{tpu_custom_call.1} parent=1 // pred_check
      _
    $region31: #{tpu_custom_call.1} parent=1 // pred_check_branch
      %50 = sbr.rel (0) target = $region33
    $region32: #{tpu_custom_call.1} parent=1 // pred_region
      %51 = dma.done [#allocation3], 128
    $region33: #{tpu_custom_call.1} parent=1 // pred_fallthru
      _
    // Predicated region
    $region34: #{tpu_custom_call.1} parent=1 // pred_check
      _
    $region35: #{tpu_custom_call.1} parent=1 // pred_check_branch
      %53 = sbr.rel (0) target = $region37
    $region36: #{tpu_custom_call.1} parent=1 // pred_region
      %54 = dma.done [#allocation6], 512
    $region37: #{tpu_custom_call.1} parent=1 // pred_fallthru
      _
    %v55 = vld [vmem:[%s0] sm:$0xff]
    %v56 = vld [vmem:[%s2] sm:$0xff]
    %v57 = vld [vmem:[%s2 + $0x8] sm:$0xff]
    %v58 = vld [vmem:[%s2 + $0x10] sm:$0xff]
    %v59 = vld [vmem:[%s2 + $0x18] sm:$0xff]
    %v60 = vld [vmem:[%s3] sm:$0x1]
    %v62 = vlaneseq
    %v63 = vshrl.u32 %v62, 7
    %v64 = vsub.s32 0, %v63
    %v65 = vrot.slane %v60, %v64
    %vm67 = vcmask 261120
    %v69 = vsel %vm67, %v55, 0
    %71 = vmatprep.subr.mxu0 0.0
    %72 = vmatpush1.msra.mxu0 0.0
    %73 = vmatprep.subr.mxu0 0.0
    %74 = vmatpush1.msra.mxu0 0.0
    %75 = vmatprep.subr.mxu0 0.0
    %76 = vmatpush1.msra.mxu0 0.0
    %77 = vmatprep.subr.mxu0 0.0
    %78 = vmatpush1.msra.mxu0 0.0
    %79 = vmatprep.subr.mxu0 0.0
    %80 = vmatpush1.msra.mxu0 0.0
    %81 = vmatprep.subr.mxu0 0.0
    %82 = vmatpush1.msra.mxu0 0.0
    %83 = vmatprep.subr.mxu0 0.0
    %84 = vmatpush1.msra.mxu0 0.0
    %85 = vmatprep.subr.mxu0 0.0
    %86 = vmatpush1.msra.mxu0 0.0
    %87 = vmatprep.subr.mxu0 0.0
    %88 = vmatpush1.msra.mxu0 0.0
    %89 = vmatprep.subr.mxu0 0.0
    %90 = vmatpush1.msra.mxu0 0.0
    %91 = vmatprep.subr.mxu0 0.0
    %92 = vmatpush1.msra.mxu0 0.0
    %93 = vmatprep.subr.mxu0 0.0
    %94 = vmatpush1.msra.mxu0 0.0
    %95 = vmatprep.subr.mxu0 0.0
    %96 = vmatpush1.msra.mxu0 %v59
    %97 = vmatprep.subr.mxu0 0.0
    %98 = vmatpush1.msra.mxu0 %v58
    %99 = vmatprep.subr.mxu0 0.0
    %100 = vmatpush1.msra.mxu0 %v57
    %101 = vmatprep.subr.mxu0 0.0
    %102 = vmatpush1.msra.mxu0 %v56
    %103 = vmatprep.subr.mxu0 0.0
    %104 = vmatpush2.msra.mxu0 0.0
    %105 = vmatprep.subr.mxu0 0.0
    %106 = vmatpush2.msra.mxu0 0.0
    %107 = vmatprep.subr.mxu0 0.0
    %108 = vmatpush2.msra.mxu0 0.0
    %109 = vmatprep.subr.mxu0 0.0
    %110 = vmatpush2.msra.mxu0 0.0
    %111 = vmatprep.subr.mxu0 0.0
    %112 = vmatpush2.msra.mxu0 0.0
    %113 = vmatprep.subr.mxu0 0.0
    %114 = vmatpush2.msra.mxu0 0.0
    %115 = vmatprep.subr.mxu0 0.0
    %116 = vmatpush2.msra.mxu0 0.0
    %117 = vmatprep.subr.mxu0 0.0
    %118 = vmatpush2.msra.mxu0 0.0
    %119 = vmatprep.subr.mxu0 0.0
    %120 = vmatpush2.msra.mxu0 0.0
    %121 = vmatprep.subr.mxu0 0.0
    %122 = vmatpush2.msra.mxu0 0.0
    %123 = vmatprep.subr.mxu0 0.0
    %124 = vmatpush2.msra.mxu0 0.0
    %125 = vmatprep.subr.mxu0 0.0
    %126 = vmatpush2.msra.mxu0 0.0
    %127 = vmatprep.subr.mxu0 0.0
    %128 = vmatpush2.msra.mxu0 0.0
    %129 = vmatprep.subr.mxu0 0.0
    %130 = vmatpush2.msra.mxu0 0.0
    %131 = vmatprep.subr.mxu0 0.0
    %132 = vmatpush2.msra.mxu0 0.0
    %133 = vmatprep.subr.mxu0 0.0
    %134 = vmatpush2.msra.mxu0 0.0
    %135 = vmatprep.mubr.f32.mxu0 0.0
    %136 = vmatmul.mubr.f32.gmra.mxu0 %v69
    %v137 = vpop.f32.mrf.mxu0
    %v138 = vadd.f32 %v65, %v137
    %v139 = vpop.f32.mrf.mxu0
    %140 = vdwg.mxu0
    %vm141 = vcmask 31744
    %142 = vst.msk [vmem:[%s7] sm:$0xff] %vm141, %v138
    %v143 = vld [vmem:[#allocation2] sm:$0xff]
    %v144 = vld [vmem:[%s4] sm:$0xff]
    %v145 = vld [vmem:[%s4 + $0x8] sm:$0xff]
    %v146 = vld [vmem:[%s4 + $0x10] sm:$0xff]
    %v147 = vld [vmem:[%s4 + $0x18] sm:$0xff]
    %v148 = vld [vmem:[%s5] sm:$0x1]
    %v150 = vlaneseq
    %v151 = vshrl.u32 %v150, 7
    %v152 = vsub.s32 0, %v151
    %v153 = vrot.slane %v148, %v152
    %v156 = vsel %vm67, %v143, 0
    %158 = vmatprep.subr.mxu0 0.0
    %159 = vmatpush1.msra.mxu0 0.0
    %160 = vmatprep.subr.mxu0 0.0
    %161 = vmatpush1.msra.mxu0 0.0
    %162 = vmatprep.subr.mxu0 0.0
    %163 = vmatpush1.msra.mxu0 0.0
    %164 = vmatprep.subr.mxu0 0.0
    %165 = vmatpush1.msra.mxu0 0.0
    %166 = vmatprep.subr.mxu0 0.0
    %167 = vmatpush1.msra.mxu0 0.0
    %168 = vmatprep.subr.mxu0 0.0
    %169 = vmatpush1.msra.mxu0 0.0
    %170 = vmatprep.subr.mxu0 0.0
    %171 = vmatpush1.msra.mxu0 0.0
    %172 = vmatprep.subr.mxu0 0.0
    %173 = vmatpush1.msra.mxu0 0.0
    %174 = vmatprep.subr.mxu0 0.0
    %175 = vmatpush1.msra.mxu0 0.0
    %176 = vmatprep.subr.mxu0 0.0
    %177 = vmatpush1.msra.mxu0 0.0
    %178 = vmatprep.subr.mxu0 0.0
    %179 = vmatpush1.msra.mxu0 0.0
    %180 = vmatprep.subr.mxu0 0.0
    %181 = vmatpush1.msra.mxu0 0.0
    %182 = vmatprep.subr.mxu0 0.0
    %183 = vmatpush1.msra.mxu0 %v147
    %184 = vmatprep.subr.mxu0 0.0
    %185 = vmatpush1.msra.mxu0 %v146
    %186 = vmatprep.subr.mxu0 0.0
    %187 = vmatpush1.msra.mxu0 %v145
    %188 = vmatprep.subr.mxu0 0.0
    %189 = vmatpush1.msra.mxu0 %v144
    %190 = vmatprep.subr.mxu0 0.0
    %191 = vmatpush2.msra.mxu0 0.0
    %192 = vmatprep.subr.mxu0 0.0
    %193 = vmatpush2.msra.mxu0 0.0
    %194 = vmatprep.subr.mxu0 0.0
    %195 = vmatpush2.msra.mxu0 0.0
    %196 = vmatprep.subr.mxu0 0.0
    %197 = vmatpush2.msra.mxu0 0.0
    %198 = vmatprep.subr.mxu0 0.0
    %199 = vmatpush2.msra.mxu0 0.0
    %200 = vmatprep.subr.mxu0 0.0
    %201 = vmatpush2.msra.mxu0 0.0
    %202 = vmatprep.subr.mxu0 0.0
    %203 = vmatpush2.msra.mxu0 0.0
    %204 = vmatprep.subr.mxu0 0.0
    %205 = vmatpush2.msra.mxu0 0.0
    %206 = vmatprep.subr.mxu0 0.0
    %207 = vmatpush2.msra.mxu0 0.0
    %208 = vmatprep.subr.mxu0 0.0
    %209 = vmatpush2.msra.mxu0 0.0
    %210 = vmatprep.subr.mxu0 0.0
    %211 = vmatpush2.msra.mxu0 0.0
    %212 = vmatprep.subr.mxu0 0.0
    %213 = vmatpush2.msra.mxu0 0.0
    %214 = vmatprep.subr.mxu0 0.0
    %215 = vmatpush2.msra.mxu0 0.0
    %216 = vmatprep.subr.mxu0 0.0
    %217 = vmatpush2.msra.mxu0 0.0
    %218 = vmatprep.subr.mxu0 0.0
    %219 = vmatpush2.msra.mxu0 0.0
    %220 = vmatprep.subr.mxu0 0.0
    %221 = vmatpush2.msra.mxu0 0.0
    %222 = vmatprep.mubr.f32.mxu0 0.0
    %223 = vmatmul.mubr.f32.gmra.mxu0 %v156
    %v224 = vpop.f32.mrf.mxu0
    %v225 = vadd.f32 %v153, %v224
    %v226 = vpop.f32.mrf.mxu0
    %227 = vdwg.mxu0
    %v228 = vld [vmem:[#allocation5] sm:$0xff]
    %vm229 = vcmask 64512
    %v231 = vsel %vm229, %v225, 0
    %233 = vmatprep.subr.mxu0 0.0
    %234 = vmatpush1.msra.mxu0 0.0
    %235 = vmatprep.subr.mxu0 0.0
    %236 = vmatpush1.msra.mxu0 0.0
    %237 = vmatprep.subr.mxu0 0.0
    %238 = vmatpush1.msra.mxu0 0.0
    %239 = vmatprep.subr.mxu0 0.0
    %240 = vmatpush1.msra.mxu0 0.0
    %241 = vmatprep.subr.mxu0 0.0
    %242 = vmatpush1.msra.mxu0 0.0
    %243 = vmatprep.subr.mxu0 0.0
    %244 = vmatpush1.msra.mxu0 0.0
    %245 = vmatprep.subr.mxu0 0.0
    %246 = vmatpush1.msra.mxu0 0.0
    %247 = vmatprep.subr.mxu0 0.0
    %248 = vmatpush1.msra.mxu0 0.0
    %249 = vmatprep.subr.mxu0 0.0
    %250 = vmatpush1.msra.mxu0 0.0
    %251 = vmatprep.subr.mxu0 0.0
    %252 = vmatpush1.msra.mxu0 0.0
    %253 = vmatprep.subr.mxu0 0.0
    %254 = vmatpush1.msra.mxu0 0.0
    %255 = vmatprep.subr.mxu0 0.0
    %256 = vmatpush1.msra.mxu0 0.0
    %257 = vmatprep.subr.mxu0 0.0
    %258 = vmatpush1.msra.mxu0 0.0
    %259 = vmatprep.subr.mxu0 0.0
    %260 = vmatpush1.msra.mxu0 0.0
    %261 = vmatprep.subr.mxu0 0.0
    %262 = vmatpush1.msra.mxu0 0.0
    %263 = vmatprep.subr.mxu0 0.0
    %264 = vmatpush1.msra.mxu0 %v228
    %265 = vmatprep.subr.mxu0 0.0
    %266 = vmatpush2.msra.mxu0 0.0
    %267 = vmatprep.subr.mxu0 0.0
    %268 = vmatpush2.msra.mxu0 0.0
    %269 = vmatprep.subr.mxu0 0.0
    %270 = vmatpush2.msra.mxu0 0.0
    %271 = vmatprep.subr.mxu0 0.0
    %272 = vmatpush2.msra.mxu0 0.0
    %273 = vmatprep.subr.mxu0 0.0
    %274 = vmatpush2.msra.mxu0 0.0
    %275 = vmatprep.subr.mxu0 0.0
    %276 = vmatpush2.msra.mxu0 0.0
    %277 = vmatprep.subr.mxu0 0.0
    %278 = vmatpush2.msra.mxu0 0.0
    %279 = vmatprep.subr.mxu0 0.0
    %280 = vmatpush2.msra.mxu0 0.0
    %281 = vmatprep.subr.mxu0 0.0
    %282 = vmatpush2.msra.mxu0 0.0
    %283 = vmatprep.subr.mxu0 0.0
    %284 = vmatpush2.msra.mxu0 0.0
    %285 = vmatprep.subr.mxu0 0.0
    %286 = vmatpush2.msra.mxu0 0.0
    %287 = vmatprep.subr.mxu0 0.0
    %288 = vmatpush2.msra.mxu0 0.0
    %289 = vmatprep.subr.mxu0 0.0
    %290 = vmatpush2.msra.mxu0 0.0
    %291 = vmatprep.subr.mxu0 0.0
    %292 = vmatpush2.msra.mxu0 0.0
    %293 = vmatprep.subr.mxu0 0.0
    %294 = vmatpush2.msra.mxu0 0.0
    %295 = vmatprep.subr.mxu0 0.0
    %296 = vmatpush2.msra.mxu0 0.0
    %297 = vmatprep.mubr.f32.mxu0 0.0
    %298 = vmatmul.mubr.f32.gmra.mxu0 %v231
    %v299 = vpop.f32.mrf.mxu0
    %v300 = vadd.f32 0.0, %v299
    %v301 = vpop.f32.mrf.mxu0
    %302 = vdwg.mxu0
    %v303 = vld [vmem:[#allocation5 + $0x8] sm:$0xff]
    %304 = vrot.lane.b32.xlu0 %v225, 120
    %v305 = vpop.permute.xlu0 %304
    %v306 = vsel %vm229, %v305, 0
    %308 = vmatprep.subr.mxu0 0.0
    %309 = vmatpush1.msra.mxu0 0.0
    %310 = vmatprep.subr.mxu0 0.0
    %311 = vmatpush1.msra.mxu0 0.0
    %312 = vmatprep.subr.mxu0 0.0
    %313 = vmatpush1.msra.mxu0 0.0
    %314 = vmatprep.subr.mxu0 0.0
    %315 = vmatpush1.msra.mxu0 0.0
    %316 = vmatprep.subr.mxu0 0.0
    %317 = vmatpush1.msra.mxu0 0.0
    %318 = vmatprep.subr.mxu0 0.0
    %319 = vmatpush1.msra.mxu0 0.0
    %320 = vmatprep.subr.mxu0 0.0
    %321 = vmatpush1.msra.mxu0 0.0
    %322 = vmatprep.subr.mxu0 0.0
    %323 = vmatpush1.msra.mxu0 0.0
    %324 = vmatprep.subr.mxu0 0.0
    %325 = vmatpush1.msra.mxu0 0.0
    %326 = vmatprep.subr.mxu0 0.0
    %327 = vmatpush1.msra.mxu0 0.0
    %328 = vmatprep.subr.mxu0 0.0
    %329 = vmatpush1.msra.mxu0 0.0
    %330 = vmatprep.subr.mxu0 0.0
    %331 = vmatpush1.msra.mxu0 0.0
    %332 = vmatprep.subr.mxu0 0.0
    %333 = vmatpush1.msra.mxu0 0.0
    %334 = vmatprep.subr.mxu0 0.0
    %335 = vmatpush1.msra.mxu0 0.0
    %336 = vmatprep.subr.mxu0 0.0
    %337 = vmatpush1.msra.mxu0 0.0
    %338 = vmatprep.subr.mxu0 0.0
    %339 = vmatpush1.msra.mxu0 %v303
    %340 = vmatprep.subr.mxu0 0.0
    %341 = vmatpush2.msra.mxu0 0.0
    %342 = vmatprep.subr.mxu0 0.0
    %343 = vmatpush2.msra.mxu0 0.0
    %344 = vmatprep.subr.mxu0 0.0
    %345 = vmatpush2.msra.mxu0 0.0
    %346 = vmatprep.subr.mxu0 0.0
    %347 = vmatpush2.msra.mxu0 0.0
    %348 = vmatprep.subr.mxu0 0.0
    %349 = vmatpush2.msra.mxu0 0.0
    %350 = vmatprep.subr.mxu0 0.0
    %351 = vmatpush2.msra.mxu0 0.0
    %352 = vmatprep.subr.mxu0 0.0
    %353 = vmatpush2.msra.mxu0 0.0
    %354 = vmatprep.subr.mxu0 0.0
    %355 = vmatpush2.msra.mxu0 0.0
    %356 = vmatprep.subr.mxu0 0.0
    %357 = vmatpush2.msra.mxu0 0.0
    %358 = vmatprep.subr.mxu0 0.0
    %359 = vmatpush2.msra.mxu0 0.0
    %360 = vmatprep.subr.mxu0 0.0
    %361 = vmatpush2.msra.mxu0 0.0
    %362 = vmatprep.subr.mxu0 0.0
    %363 = vmatpush2.msra.mxu0 0.0
    %364 = vmatprep.subr.mxu0 0.0
    %365 = vmatpush2.msra.mxu0 0.0
    %366 = vmatprep.subr.mxu0 0.0
    %367 = vmatpush2.msra.mxu0 0.0
    %368 = vmatprep.subr.mxu0 0.0
    %369 = vmatpush2.msra.mxu0 0.0
    %370 = vmatprep.subr.mxu0 0.0
    %371 = vmatpush2.msra.mxu0 0.0
    %372 = vmatprep.mubr.f32.mxu0 0.0
    %373 = vmatmul.mubr.f32.gmra.mxu0 %v306
    %v374 = vpop.f32.mrf.mxu0
    %v375 = vadd.f32 0.0, %v374
    %v376 = vpop.f32.mrf.mxu0
    %377 = vdwg.mxu0
    %v378 = vld [vmem:[#allocation5 + $0x10] sm:$0xff]
    %379 = vrot.lane.b32.xlu0 %v225, 112
    %v380 = vpop.permute.xlu0 %379
    %v381 = vsel %vm229, %v380, 0
    %383 = vmatprep.subr.mxu0 0.0
    %384 = vmatpush1.msra.mxu0 0.0
    %385 = vmatprep.subr.mxu0 0.0
    %386 = vmatpush1.msra.mxu0 0.0
    %387 = vmatprep.subr.mxu0 0.0
    %388 = vmatpush1.msra.mxu0 0.0
    %389 = vmatprep.subr.mxu0 0.0
    %390 = vmatpush1.msra.mxu0 0.0
    %391 = vmatprep.subr.mxu0 0.0
    %392 = vmatpush1.msra.mxu0 0.0
    %393 = vmatprep.subr.mxu0 0.0
    %394 = vmatpush1.msra.mxu0 0.0
    %395 = vmatprep.subr.mxu0 0.0
    %396 = vmatpush1.msra.mxu0 0.0
    %397 = vmatprep.subr.mxu0 0.0
    %398 = vmatpush1.msra.mxu0 0.0
    %399 = vmatprep.subr.mxu0 0.0
    %400 = vmatpush1.msra.mxu0 0.0
    %401 = vmatprep.subr.mxu0 0.0
    %402 = vmatpush1.msra.mxu0 0.0
    %403 = vmatprep.subr.mxu0 0.0
    %404 = vmatpush1.msra.mxu0 0.0
    %405 = vmatprep.subr.mxu0 0.0
    %406 = vmatpush1.msra.mxu0 0.0
    %407 = vmatprep.subr.mxu0 0.0
    %408 = vmatpush1.msra.mxu0 0.0
    %409 = vmatprep.subr.mxu0 0.0
    %410 = vmatpush1.msra.mxu0 0.0
    %411 = vmatprep.subr.mxu0 0.0
    %412 = vmatpush1.msra.mxu0 0.0
    %413 = vmatprep.subr.mxu0 0.0
    %414 = vmatpush1.msra.mxu0 %v378
    %415 = vmatprep.subr.mxu0 0.0
    %416 = vmatpush2.msra.mxu0 0.0
    %417 = vmatprep.subr.mxu0 0.0
    %418 = vmatpush2.msra.mxu0 0.0
    %419 = vmatprep.subr.mxu0 0.0
    %420 = vmatpush2.msra.mxu0 0.0
    %421 = vmatprep.subr.mxu0 0.0
    %422 = vmatpush2.msra.mxu0 0.0
    %423 = vmatprep.subr.mxu0 0.0
    %424 = vmatpush2.msra.mxu0 0.0
    %425 = vmatprep.subr.mxu0 0.0
    %426 = vmatpush2.msra.mxu0 0.0
    %427 = vmatprep.subr.mxu0 0.0
    %428 = vmatpush2.msra.mxu0 0.0
    %429 = vmatprep.subr.mxu0 0.0
    %430 = vmatpush2.msra.mxu0 0.0
    %431 = vmatprep.subr.mxu0 0.0
    %432 = vmatpush2.msra.mxu0 0.0
    %433 = vmatprep.subr.mxu0 0.0
    %434 = vmatpush2.msra.mxu0 0.0
    %435 = vmatprep.subr.mxu0 0.0
    %436 = vmatpush2.msra.mxu0 0.0
    %437 = vmatprep.subr.mxu0 0.0
    %438 = vmatpush2.msra.mxu0 0.0
    %439 = vmatprep.subr.mxu0 0.0
    %440 = vmatpush2.msra.mxu0 0.0
    %441 = vmatprep.subr.mxu0 0.0
    %442 = vmatpush2.msra.mxu0 0.0
    %443 = vmatprep.subr.mxu0 0.0
    %444 = vmatpush2.msra.mxu0 0.0
    %445 = vmatprep.subr.mxu0 0.0
    %446 = vmatpush2.msra.mxu0 0.0
    %447 = vmatprep.mubr.f32.mxu0 0.0
    %448 = vmatmul.mubr.f32.gmra.mxu0 %v381
    %v449 = vpop.f32.mrf.mxu0
    %v450 = vadd.f32 0.0, %v449
    %v451 = vpop.f32.mrf.mxu0
    %452 = vdwg.mxu0
    %v453 = vld [vmem:[#allocation5 + $0x18] sm:$0xff]
    %454 = vrot.lane.b32.xlu0 %v225, 104
    %v455 = vpop.permute.xlu0 %454
    %v456 = vsel %vm229, %v455, 0
    %458 = vmatprep.subr.mxu0 0.0
    %459 = vmatpush1.msra.mxu0 0.0
    %460 = vmatprep.subr.mxu0 0.0
    %461 = vmatpush1.msra.mxu0 0.0
    %462 = vmatprep.subr.mxu0 0.0
    %463 = vmatpush1.msra.mxu0 0.0
    %464 = vmatprep.subr.mxu0 0.0
    %465 = vmatpush1.msra.mxu0 0.0
    %466 = vmatprep.subr.mxu0 0.0
    %467 = vmatpush1.msra.mxu0 0.0
    %468 = vmatprep.subr.mxu0 0.0
    %469 = vmatpush1.msra.mxu0 0.0
    %470 = vmatprep.subr.mxu0 0.0
    %471 = vmatpush1.msra.mxu0 0.0
    %472 = vmatprep.subr.mxu0 0.0
    %473 = vmatpush1.msra.mxu0 0.0
    %474 = vmatprep.subr.mxu0 0.0
    %475 = vmatpush1.msra.mxu0 0.0
    %476 = vmatprep.subr.mxu0 0.0
    %477 = vmatpush1.msra.mxu0 0.0
    %478 = vmatprep.subr.mxu0 0.0
    %479 = vmatpush1.msra.mxu0 0.0
    %480 = vmatprep.subr.mxu0 0.0
    %481 = vmatpush1.msra.mxu0 0.0
    %482 = vmatprep.subr.mxu0 0.0
    %483 = vmatpush1.msra.mxu0 0.0
    %484 = vmatprep.subr.mxu0 0.0
    %485 = vmatpush1.msra.mxu0 0.0
    %486 = vmatprep.subr.mxu0 0.0
    %487 = vmatpush1.msra.mxu0 0.0
    %488 = vmatprep.subr.mxu0 0.0
    %489 = vmatpush1.msra.mxu0 %v453
    %490 = vmatprep.subr.mxu0 0.0
    %491 = vmatpush2.msra.mxu0 0.0
    %492 = vmatprep.subr.mxu0 0.0
    %493 = vmatpush2.msra.mxu0 0.0
    %494 = vmatprep.subr.mxu0 0.0
    %495 = vmatpush2.msra.mxu0 0.0
    %496 = vmatprep.subr.mxu0 0.0
    %497 = vmatpush2.msra.mxu0 0.0
    %498 = vmatprep.subr.mxu0 0.0
    %499 = vmatpush2.msra.mxu0 0.0
    %500 = vmatprep.subr.mxu0 0.0
    %501 = vmatpush2.msra.mxu0 0.0
    %502 = vmatprep.subr.mxu0 0.0
    %503 = vmatpush2.msra.mxu0 0.0
    %504 = vmatprep.subr.mxu0 0.0
    %505 = vmatpush2.msra.mxu0 0.0
    %506 = vmatprep.subr.mxu0 0.0
    %507 = vmatpush2.msra.mxu0 0.0
    %508 = vmatprep.subr.mxu0 0.0
    %509 = vmatpush2.msra.mxu0 0.0
    %510 = vmatprep.subr.mxu0 0.0
    %511 = vmatpush2.msra.mxu0 0.0
    %512 = vmatprep.subr.mxu0 0.0
    %513 = vmatpush2.msra.mxu0 0.0
    %514 = vmatprep.subr.mxu0 0.0
    %515 = vmatpush2.msra.mxu0 0.0
    %516 = vmatprep.subr.mxu0 0.0
    %517 = vmatpush2.msra.mxu0 0.0
    %518 = vmatprep.subr.mxu0 0.0
    %519 = vmatpush2.msra.mxu0 0.0
    %520 = vmatprep.subr.mxu0 0.0
    %521 = vmatpush2.msra.mxu0 0.0
    %522 = vmatprep.mubr.f32.mxu0 0.0
    %523 = vmatmul.mubr.f32.gmra.mxu0 %v456
    %v524 = vpop.f32.mrf.mxu0
    %v525 = vadd.f32 0.0, %v524
    %v526 = vpop.f32.mrf.mxu0
    %527 = vdwg.mxu0
    %v528 = vpack.c.bf16 %v375, %v300
    %v529 = vpack.c.bf16 %v525, %v450
    %v532 = vunpack.c.l.b16 %v528
    %v533 = vunpack.c.h.b16 %v528
    %v534 = vunpack.c.l.b16 %v529
    %v535 = vunpack.c.h.b16 %v529
    %v536 = vpack.c.b16 %v532, %v532
    %v537 = vpack.c.b16 %v533, %v533
    %v538 = vpack.c.b16 %v534, %v534
    %v539 = vpack.c.b16 %v535, %v535
    %vm544 = vcmask 257024
    %545 = vst.msk [vmem:[#allocation7] sm:$0xf] %vm544, %v536
    %546 = vst.msk [vmem:[#allocation7 + $0x4] sm:$0xf] %vm544, %v537
    %547 = vst.msk [vmem:[#allocation7 + $0x8] sm:$0xf] %vm544, %v538
    %548 = vst.msk [vmem:[#allocation7 + $0xc] sm:$0xf] %vm544, %v539
    // Predicated region
    $region38: #{tpu_custom_call.1} parent=1 // pred_check
      _
    $region39: #{tpu_custom_call.1} parent=1 // pred_check_branch
      %550 = sbr.rel (0) target = $region41
    $region40: #{tpu_custom_call.1} parent=1 // pred_region
      _
    $region41: #{tpu_custom_call.1} parent=1 // pred_fallthru
      _
    // Predicated region
    $region42: #{tpu_custom_call.1} parent=1 // pred_check
      _
    $region43: #{tpu_custom_call.1} parent=1 // pred_check_branch
      %552 = sbr.rel (0) target = $region45
    $region44: #{tpu_custom_call.1} parent=1 // pred_region
      %s554 = ssub.s32 256, 256
      %555 = vsyncadd [#allocation4], %s554
      %s556 = sshll.u32 [#allocation7], 4
      %s557 = int_to_ptr.vmem [resolvable:$true] %s556
      %562 = dma.vmem_to_hbm [thread:$0]  %s557, 256, %s8, [#allocation4], 64, 64, 4
    $region45: #{tpu_custom_call.1} parent=1 // pred_fallthru
      _
    // Predicated region
    $region46: #{tpu_custom_call.1} parent=1 // pred_check
      _
    $region47: #{tpu_custom_call.1} parent=1 // pred_check_branch
      %564 = sbr.rel (0) target = $region49
    $region48: #{tpu_custom_call.1} parent=1 // pred_region
      _
    $region49: #{tpu_custom_call.1} parent=1 // pred_fallthru
      _
    // Predicated region
    $region50: #{tpu_custom_call.1} parent=1 // pred_check
      _
    $region51: #{tpu_custom_call.1} parent=1 // pred_check_branch
      %566 = sbr.rel (0) target = $region53
    $region52: #{tpu_custom_call.1} parent=1 // pred_region
      %567 = dma.done [#allocation4], 256
    $region53: #{tpu_custom_call.1} parent=1 // pred_fallthru
      _
    %568 = vsyncpa [#allocation3], 1
    %569 = vsyncpa [#allocation6], 1
    %570 = vsyncpa [#allocation4], 1

</llo_original>
